<compile_context>
chip_gen: v7x
topology: tpu7x:2x2x1
jax: 0.10.0
libtpu: 0.0.40
codegen_flags: <defaults>
</compile_context>

<pallas_src>
import functools

import jax
import jax.numpy as jnp
from jax import lax
from jax.experimental import pallas as pl
from jax.experimental.pallas import tpu as pltpu

CE_IGNORE = -100     # nn.CrossEntropyLoss default ignore_index
FOCAL_IGNORE = 255   # FocalLoss(ignore_index=255)
# NOTE: labels equal to 255 are *kept* in the plain-CE term with their target logit treated as 0
# (PyTorch would raise for target >= C there); valid usage keeps labels in [0, C) plus the ignore
# values, where this kernel matches exactly.  All-ignored batches produce NaN, like PyTorch.


def _ce_partials_kernel(logits_ref, gts_ref, out_ref,
                        s_ce_ref, c_ce_ref, s_fo_ref, c_fo_ref,
                        *, T, tile_T, chunk, tiles_per_p, num_t, use_mxu, may_overrun):
    """Per-(n, p) group: accumulate [ce_sum, ce_cnt, focal_ce_sum, focal_cnt] over T tiles.

    logits_ref: (C, tile_T) native dtype      gts_ref: (1, tile_T) int32
    out_ref:    (4, 128)    float32 (written once, at the last T tile of the group)
    s/c_*_ref:  (1, chunk)  float32 VMEM scratch accumulators (lane-wise partial sums)
    """
    p = pl.program_id(1)
    t = pl.program_id(2)
    C = logits_ref.shape[0]
    n_chunks = tile_T // chunk

    @pl.when(t == 0)
    def _init():
        s_ce_ref[...] = jnp.zeros_like(s_ce_ref)
        c_ce_ref[...] = jnp.zeros_like(c_ce_ref)
        s_fo_ref[...] = jnp.zeros_like(s_fo_ref)
        c_fo_ref[...] = jnp.zeros_like(c_fo_ref)

    g_tile = p * tiles_per_p + t          # un-clamped global T-tile index
    base = g_tile * tile_T                # first frame position covered by this tile

    # Hoisted loop-invariant constants (JAX does not CSE broadcast_in_dim inside loops).
    ones_row = jnp.ones((1, C), jnp.float32)                 # MXU reduction vector
    cls = lax.broadcasted_iota(jnp.int32, (C, chunk), 0)     # class ids on the sublane axis
    lane = lax.broadcasted_iota(jnp.int32, (1, chunk), 1)    # lane position inside a chunk

    def accum(x, g, pos, carry):
        s_ce, c_ce, s_fo, c_fo = carry
        m = jnp.max(x, axis=0, keepdims=True)                # (1, chunk)  XLU
        e = jnp.exp(x - m)                                    # EUP
        oh_x = jnp.where(cls == g, x, 0.0)                    # VPU one-hot gather
        if use_mxu:
            # Offload the two cross-class sums to the otherwise-idle MXU.
            se = jnp.dot(ones_row, e, preferred_element_type=jnp.float32)
            tgt = jnp.dot(ones_row, oh_x, preferred_element_type=jnp.float32)
        else:
            se = jnp.sum(e, axis=0, keepdims=True)
            tgt = jnp.sum(oh_x, axis=0, keepdims=True)
        ce = m + jnp.log(se) - tgt                            # per-frame CE (1, chunk)

        in_range = pos < T                                    # mask ragged / overrun lanes
        v_ce = in_range & (g != CE_IGNORE)
        v_fo = v_ce & (g != FOCAL_IGNORE)
        return (s_ce + jnp.where(v_ce, ce, 0.0),              # jnp.where is NaN-safe
                c_ce + v_ce.astype(jnp.float32),
                s_fo + jnp.where(v_fo, ce, 0.0),
                c_fo + v_fo.astype(jnp.float32))

    def step():
        zero = jnp.zeros((1, chunk), jnp.float32)
        carry0 = (zero, zero, zero, zero)
        if n_chunks == 1:
            carry = accum(logits_ref[...].astype(jnp.float32), gts_ref[...],
                          base + lane, carry0)
        else:
            def body(ci, carry):
                off = pl.multiple_of(ci * chunk, chunk)
                x = logits_ref[:, pl.ds(off, chunk)].astype(jnp.float32)
                g = gts_ref[:, pl.ds(off, chunk)]
                return accum(x, g, base + off + lane, carry)
            carry = lax.fori_loop(0, n_chunks, body, carry0)
        s_ce, c_ce, s_fo, c_fo = carry
        s_ce_ref[...] += s_ce
        c_ce_ref[...] += c_ce
        s_fo_ref[...] += s_fo
        c_fo_ref[...] += c_fo

    if may_overrun:
        pl.when(base < T)(step)       # fully-overrun (clamped-DMA) tiles contribute nothing
    else:
        step()

    @pl.when(t == pl.num_programs(2) - 1)
    def _finalize():
        # Cross-lane reduce once per (n, p) group; pack 4 scalars into the tiny output block.
        row = lax.broadcasted_iota(jnp.int32, (4, 128), 0)
        out_ref[...] = (jnp.where(row == 0, jnp.sum(s_ce_ref[...]), 0.0)
                        + jnp.where(row == 1, jnp.sum(c_ce_ref[...]), 0.0)
                        + jnp.where(row == 2, jnp.sum(s_fo_ref[...]), 0.0)
                        + jnp.where(row == 3, jnp.sum(c_fo_ref[...]), 0.0))


def _vmem_capacity_bytes():
    try:
        info = pltpu.get_tpu_info()
        for attr in ("vmem_capacity_bytes", "vmem_size_bytes", "vmem_bytes"):
            v = getattr(info, attr, None)
            if v:
                return int(v)
    except Exception:
        pass
    return 64 << 20   # conservative per-core fallback (v7x size); safe on every generation


def _pick_tiling(N, C, T, itemsize, max_tile_t):
    cap = _vmem_capacity_bytes()
    # Per-buffer logits payload: >=1 MiB (amortize ~0.35us/step), <=6 MiB, scaled with chip VMEM.
    logits_budget = max(1 << 20, min(6 << 20, cap // 12))
    max_tile_t = max(128, (int(max_tile_t) // 128) * 128)
    lanes = logits_budget // max(1, C * itemsize)
    tile = min(lanes, max_tile_t)
    if tile >= 512:
        tile = (tile // 512) * 512        # exact number of 512-lane compute chunks
    else:
        tile = max(128, (tile // 128) * 128)

    if T <= tile:
        tile_T, num_t, chunk = T, 1, T    # single full-extent tile (any T is legal)
    else:
        tile_T = tile
        num_t = pl.cdiv(T, tile_T)
        chunk = min(512, tile_T)

    # Split the T-tile loop over two "parallel" groups so the second TensorCore (v7x) has work
    # when the batch alone cannot feed it.  Harmless (near-zero waste) on single-core chips.
    P = 2 if (N == 1 and num_t >= 2) else 1
    tiles_per_p = pl.cdiv(num_t, P)

    needed = (2 * C * tile_T * itemsize           # logits (double-buffered)
              + 2 * 8 * tile_T * 4                # labels (padded to 8 sublanes), double-buffered
              + 4 * 8 * max(chunk, 128) * 4       # 4 lane-wise accumulators
              + 2 * 8 * 128 * 4)                  # output block
    vmem_limit = min(cap * 3 // 4, max(2 * needed, 32 << 20))
    return tile_T, num_t, chunk, P, tiles_per_p, int(vmem_limit)


def _ce_partials(preds, labels, *, tile_T, num_t, chunk, P, tiles_per_p, vmem_limit):
    N, C, T = preds.shape
    itemsize = preds.dtype.itemsize
    use_mxu = (chunk % 128 == 0) and C > 1
    may_overrun = (P * tiles_per_p) > num_t

    def t_block(p, t):
        g = p * tiles_per_p + t
        if may_overrun:                      # static branch; clamp keeps the DMA in range,
            g = jnp.minimum(g, num_t - 1)    # the overrun tile is fully masked in-kernel
        return g

    kernel = functools.partial(
        _ce_partials_kernel, T=T, tile_T=tile_T, chunk=chunk,
        tiles_per_p=tiles_per_p, num_t=num_t,
        use_mxu=use_mxu, may_overrun=may_overrun)

    cost = pl.CostEstimate(
        flops=int(8 * N * C * T),
        transcendentals=int(N * (C + 1) * T),
        bytes_accessed=int(N * C * T * itemsize + N * T * 4 + N * P * 4 * 128 * 4),
    )

    return pl.pallas_call(
        kernel,
        out_shape=jax.ShapeDtypeStruct((N, P, 4, 128), jnp.float32),
        grid_spec=pltpu.PrefetchScalarGridSpec(
            num_scalar_prefetch=0,
            grid=(N, P, tiles_per_p),
            in_specs=[
                pl.BlockSpec((None, C, tile_T), lambda n, p, t: (n, 0, t_block(p, t))),
                pl.BlockSpec((None, 1, tile_T), lambda n, p, t: (n, 0, t_block(p, t))),
            ],
            out_specs=pl.BlockSpec((None, None, 4, 128), lambda n, p, t: (n, p, 0, 0)),
            scratch_shapes=[pltpu.VMEM((1, chunk), jnp.float32)] * 4,
        ),
        compiler_params=pltpu.CompilerParams(
            dimension_semantics=("parallel", "parallel", "arbitrary"),
            vmem_limit_bytes=vmem_limit),
        cost_estimate=cost,
    )(preds, labels)


def action_segmentation_loss(preds, gts, *, ce_weight=1.0, focal_weight=1.0,
                             gamma=2.0, alpha=0.25, max_tile_t=32768):
    """preds: float (N, C, T) in native dtype; gts: int (N, T). Returns the scalar loss."""
    N, C, T = preds.shape
    labels = gts.reshape(N, 1, T).astype(jnp.int32)

    tile_T, num_t, chunk, P, tiles_per_p, vmem_limit = _pick_tiling(
        N, C, T, preds.dtype.itemsize, max_tile_t)
    part = _ce_partials(preds, labels, tile_T=tile_T, num_t=num_t, chunk=chunk,
                        P=P, tiles_per_p=tiles_per_p, vmem_limit=vmem_limit)   # (N, P, 4, 128)

    sums = jnp.sum(part[..., 0], axis=(0, 1))     # (4,) tiny epilogue reduce
    ce_mean = sums[0] / sums[1]       # nn.CrossEntropyLoss (mean reduction, ignore_index=-100)
    ce_f_mean = sums[2] / sums[3]     # CE with ignore_index=255 (input of FocalLoss)

    # FocalLoss(gamma, alpha, batch_average=True) applied to the *mean* CE, as in the reference.
    logpt = -ce_f_mean
    pt = jnp.exp(logpt)
    focal = -((1.0 - pt) ** gamma) * (alpha * logpt) / N

    # TODO(synk): TMSE / GaussianSimilarityTMSE branches are disabled in the default config
    # (tmse=False, gstmse=False) and are not implemented here.
    return ce_weight * ce_mean + focal_weight * focal


if __name__ == "__main__":
    key = jax.random.PRNGKey(0)
    loss_fn = jax.jit(action_segmentation_loss, static_argnames=("max_tile_t",))

    def ref_loss(p, g, gamma=2.0, alpha=0.25):
        n, c, _ = p.shape
        logp = jax.nn.log_softmax(p.astype(jnp.float32), axis=1)
        safe = jnp.clip(g, 0, c - 1)
        ce_all = -jnp.take_along_axis(logp, safe[:, None, :], axis=1)[:, 0, :]
        v_ce = g != CE_IGNORE
        v_fo = v_ce & (g != FOCAL_IGNORE)
        ce_mean = jnp.sum(jnp.where(v_ce, ce_all, 0.0)) / jnp.sum(v_ce)
        ce_f = jnp.sum(jnp.where(v_fo, ce_all, 0.0)) / jnp.sum(v_fo)
        logpt = -ce_f
        pt = jnp.exp(logpt)
        return ce_mean - ((1.0 - pt) ** gamma) * (alpha * logpt) / n

    # 1) f32, single-tile path (tile_T == T).
    N, C, T = 2, 8, 300
    k1, k2 = jax.random.split(key)
    preds = jax.random.normal(k1, (N, C, T), dtype=jnp.float32)
    gts = jax.random.randint(k2, (N, T), 0, C, dtype=jnp.int32)
    out1 = jax.block_until_ready(loss_fn(preds, gts))
    ref1 = ref_loss(preds, gts)
    assert jnp.allclose(out1, ref1, rtol=1e-5, atol=1e-5), (out1, ref1)

    # 2) Multi-tile path: ragged (masked) last tile + MXU class-reduction (chunk=128).
    out2 = jax.block_until_ready(loss_fn(preds, gts, max_tile_t=128))
    assert jnp.allclose(out2, ref1, rtol=1e-5, atol=1e-5), (out2, ref1)

    # 3) N=1 long sequence: 2-way "parallel" T split (feeds the 2nd TensorCore on v7x),
    #    odd tile count (clamped index map + fully-masked overrun step), and -100 ignore frames.
    k3, k4 = jax.random.split(k1)
    preds1 = jax.random.normal(k3, (1, 8, 1100), dtype=jnp.float32)
    gts1 = jax.random.randint(k4, (1, 1100), 0, 8, dtype=jnp.int32)
    gts1 = gts1.at[:, ::7].set(CE_IGNORE)
    out3 = jax.block_until_ready(loss_fn(preds1, gts1, max_tile_t=128))
    ref3 = ref_loss(preds1, gts1)
    assert jnp.allclose(out3, ref3, rtol=1e-5, atol=1e-5), (out3, ref3)

    # 4) bf16 logits streamed in native dtype (cast to f32 in-register).
    preds_bf16 = preds.astype(jnp.bfloat16)
    out4 = jax.block_until_ready(loss_fn(preds_bf16, gts))
    ref4 = ref_loss(preds_bf16, gts)
    assert jnp.allclose(out4, ref4, rtol=1e-4, atol=1e-4), (out4, ref4)

    print("KERNEL_OK")
</pallas_src>

<mosaic_0001>
module attributes {stable_mosaic.version = 11 : i64} {
  func.func @_ce_partials_kernel(%arg0: i32, %arg1: i32, %arg2: i32, %arg3: memref<1x8x300xf32, #tpu.memory_space<vmem>>, %arg4: memref<1x1x300xi32, #tpu.memory_space<vmem>>, %arg5: memref<1x1x4x128xf32, #tpu.memory_space<vmem>>, %arg6: memref<1x300xf32, #tpu.memory_space<vmem>>, %arg7: memref<1x300xf32, #tpu.memory_space<vmem>>, %arg8: memref<1x300xf32, #tpu.memory_space<vmem>>, %arg9: memref<1x300xf32, #tpu.memory_space<vmem>>) attributes {dimension_semantics = [#tpu.dimension_semantics<parallel>, #tpu.dimension_semantics<parallel>, #tpu.dimension_semantics<arbitrary>], iteration_bounds = array<i64: 2, 1, 1>, scalar_prefetch = 0 : i64, scratch_operands = 4 : i64, tpu.core_type = #tpu.core_type<tc>, window_params = [{transform_indices = @transform_0, window_bounds = array<i64: 1, 8, 300>}, {transform_indices = @transform_1, window_bounds = array<i64: 1, 1, 300>}, {transform_indices = @transform_2, window_bounds = array<i64: 1, 1, 4, 128>}]} {
    %c0_i32 = arith.constant 0 : i32
    %0 = arith.cmpi eq, %arg2, %c0_i32 : i32
    %1 = arith.extui %0 : i1 to i32
    %c0_i32_0 = arith.constant 0 : i32
    %2 = arith.cmpi ne, %1, %c0_i32_0 : i32
    scf.if %2 {
      %cst_31 = arith.constant 0.000000e+00 : f32
      %66 = vector.broadcast %cst_31 : f32 to vector<1x300xf32>
      %c0_32 = arith.constant 0 : index
      %c0_33 = arith.constant 0 : index
      %67 = vector.load %arg6[%c0_32, %c0_33] : memref<1x300xf32, #tpu.memory_space<vmem>>, vector<1x300xf32>
      tpu.vector_store %arg6[%c0_32, %c0_33], %66 {strides = array<i32>} : memref<1x300xf32, #tpu.memory_space<vmem>>, vector<1x300xf32>,
      %cst_34 = arith.constant 0.000000e+00 : f32
      %68 = vector.broadcast %cst_34 : f32 to vector<1x300xf32>
      %c0_35 = arith.constant 0 : index
      %c0_36 = arith.constant 0 : index
      %69 = vector.load %arg7[%c0_35, %c0_36] : memref<1x300xf32, #tpu.memory_space<vmem>>, vector<1x300xf32>
      tpu.vector_store %arg7[%c0_35, %c0_36], %68 {strides = array<i32>} : memref<1x300xf32, #tpu.memory_space<vmem>>, vector<1x300xf32>,
      %cst_37 = arith.constant 0.000000e+00 : f32
      %70 = vector.broadcast %cst_37 : f32 to vector<1x300xf32>
      %c0_38 = arith.constant 0 : index
      %c0_39 = arith.constant 0 : index
      %71 = vector.load %arg8[%c0_38, %c0_39] : memref<1x300xf32, #tpu.memory_space<vmem>>, vector<1x300xf32>
      tpu.vector_store %arg8[%c0_38, %c0_39], %70 {strides = array<i32>} : memref<1x300xf32, #tpu.memory_space<vmem>>, vector<1x300xf32>,
      %cst_40 = arith.constant 0.000000e+00 : f32
      %72 = vector.broadcast %cst_40 : f32 to vector<1x300xf32>
      %c0_41 = arith.constant 0 : index
      %c0_42 = arith.constant 0 : index
      %73 = vector.load %arg9[%c0_41, %c0_42] : memref<1x300xf32, #tpu.memory_space<vmem>>, vector<1x300xf32>
      tpu.vector_store %arg9[%c0_41, %c0_42], %72 {strides = array<i32>} : memref<1x300xf32, #tpu.memory_space<vmem>>, vector<1x300xf32>,
    } else {
    }
    %c1_i32 = arith.constant 1 : i32
    %3 = arith.muli %arg1, %c1_i32 : i32
    %4 = arith.addi %3, %arg2 : i32
    %c300_i32 = arith.constant 300 : i32
    %5 = arith.muli %4, %c300_i32 : i32
    %6 = tpu.iota {dimensions = array<i32: 0>} : vector<8x300xi32>
    %7 = tpu.iota {dimensions = array<i32: 1>} : vector<1x300xi32>
    %cst = arith.constant 0.000000e+00 : f32
    %8 = vector.broadcast %cst : f32 to vector<1x300xf32>
    %c0 = arith.constant 0 : index
    %c0_1 = arith.constant 0 : index
    %c0_2 = arith.constant 0 : index
    %9 = vector.load %arg3[%c0, %c0_1, %c0_2] : memref<1x8x300xf32, #tpu.memory_space<vmem>>, vector<1x8x300xf32>
    %10 = vector.shape_cast %9 : vector<1x8x300xf32> to vector<8x300xf32>
    %c0_3 = arith.constant 0 : index
    %c0_4 = arith.constant 0 : index
    %c0_5 = arith.constant 0 : index
    %11 = vector.load %arg4[%c0_3, %c0_4, %c0_5] : memref<1x1x300xi32, #tpu.memory_space<vmem>>, vector<1x1x300xi32>
    %12 = vector.shape_cast %11 : vector<1x1x300xi32> to vector<1x300xi32>
    %13 = vector.broadcast %5 : i32 to vector<1x300xi32>
    %14 = arith.addi %13, %7 : vector<1x300xi32>
    %cst_6 = arith.constant dense<0xFF800000> : vector<300xf32>
    %15 = vector.multi_reduction <maximumf>, %10, %cst_6 [0] : vector<8x300xf32> to vector<300xf32>
    %16 = vector.shape_cast %15 : vector<300xf32> to vector<1x300xf32>
    %17 = vector.broadcast %16 : vector<1x300xf32> to vector<8x300xf32>
    %18 = arith.subf %10, %17 : vector<8x300xf32>
    %19 = math.exp %18 : vector<8x300xf32>
    %20 = vector.broadcast %12 : vector<1x300xi32> to vector<8x300xi32>
    %21 = arith.cmpi eq, %6, %20 : vector<8x300xi32>
    %cst_7 = arith.constant 0.000000e+00 : f32
    %22 = vector.broadcast %cst_7 : f32 to vector<8x300xf32>
    %23 = arith.select %21, %10, %22 : vector<8x300xi1>, vector<8x300xf32>
    %cst_8 = arith.constant dense<0.000000e+00> : vector<300xf32>
    %24 = vector.multi_reduction <add>, %19, %cst_8 [0] : vector<8x300xf32> to vector<300xf32>
    %25 = vector.shape_cast %24 : vector<300xf32> to vector<1x300xf32>
    %cst_9 = arith.constant dense<0.000000e+00> : vector<300xf32>
    %26 = vector.multi_reduction <add>, %23, %cst_9 [0] : vector<8x300xf32> to vector<300xf32>
    %27 = vector.shape_cast %26 : vector<300xf32> to vector<1x300xf32>
    %28 = math.log %25 : vector<1x300xf32>
    %29 = arith.addf %16, %28 : vector<1x300xf32>
    %30 = arith.subf %29, %27 : vector<1x300xf32>
    %c300_i32_10 = arith.constant 300 : i32
    %31 = vector.broadcast %c300_i32_10 : i32 to vector<1x300xi32>
    %32 = arith.cmpi slt, %14, %31 : vector<1x300xi32>
    %c-100_i32 = arith.constant -100 : i32
    %33 = vector.broadcast %c-100_i32 : i32 to vector<1x300xi32>
    %34 = arith.cmpi ne, %12, %33 : vector<1x300xi32>
    %35 = arith.andi %32, %34 : vector<1x300xi1>
    %c255_i32 = arith.constant 255 : i32
    %36 = vector.broadcast %c255_i32 : i32 to vector<1x300xi32>
    %37 = arith.cmpi ne, %12, %36 : vector<1x300xi32>
    %38 = arith.andi %35, %37 : vector<1x300xi1>
    %cst_11 = arith.constant 0.000000e+00 : f32
    %39 = vector.broadcast %cst_11 : f32 to vector<1x300xf32>
    %40 = arith.select %35, %30, %39 : vector<1x300xi1>, vector<1x300xf32>
    %41 = arith.addf %8, %40 : vector<1x300xf32>
    %42 = arith.extui %35 : vector<1x300xi1> to vector<1x300xi32>
    %43 = arith.sitofp %42 : vector<1x300xi32> to vector<1x300xf32>
    %44 = arith.addf %8, %43 : vector<1x300xf32>
    %cst_12 = arith.constant 0.000000e+00 : f32
    %45 = vector.broadcast %cst_12 : f32 to vector<1x300xf32>
    %46 = arith.select %38, %30, %45 : vector<1x300xi1>, vector<1x300xf32>
    %47 = arith.addf %8, %46 : vector<1x300xf32>
    %48 = arith.extui %38 : vector<1x300xi1> to vector<1x300xi32>
    %49 = arith.sitofp %48 : vector<1x300xi32> to vector<1x300xf32>
    %50 = arith.addf %8, %49 : vector<1x300xf32>
    %c0_13 = arith.constant 0 : index
    %c0_14 = arith.constant 0 : index
    %51 = vector.load %arg6[%c0_13, %c0_14] : memref<1x300xf32, #tpu.memory_space<vmem>>, vector<1x300xf32>
    %52 = arith.addf %51, %41 : vector<1x300xf32>
    %c0_15 = arith.constant 0 : index
    %c0_16 = arith.constant 0 : index
    %53 = vector.load %arg6[%c0_15, %c0_16] : memref<1x300xf32, #tpu.memory_space<vmem>>, vector<1x300xf32>
    tpu.vector_store %arg6[%c0_15, %c0_16], %52 {strides = array<i32>} : memref<1x300xf32, #tpu.memory_space<vmem>>, vector<1x300xf32>,
    %c0_17 = arith.constant 0 : index
    %c0_18 = arith.constant 0 : index
    %54 = vector.load %arg7[%c0_17, %c0_18] : memref<1x300xf32, #tpu.memory_space<vmem>>, vector<1x300xf32>
    %55 = arith.addf %54, %44 : vector<1x300xf32>
    %c0_19 = arith.constant 0 : index
    %c0_20 = arith.constant 0 : index
    %56 = vector.load %arg7[%c0_19, %c0_20] : memref<1x300xf32, #tpu.memory_space<vmem>>, vector<1x300xf32>
    tpu.vector_store %arg7[%c0_19, %c0_20], %55 {strides = array<i32>} : memref<1x300xf32, #tpu.memory_space<vmem>>, vector<1x300xf32>,
    %c0_21 = arith.constant 0 : index
    %c0_22 = arith.constant 0 : index
    %57 = vector.load %arg8[%c0_21, %c0_22] : memref<1x300xf32, #tpu.memory_space<vmem>>, vector<1x300xf32>
    %58 = arith.addf %57, %47 : vector<1x300xf32>
    %c0_23 = arith.constant 0 : index
    %c0_24 = arith.constant 0 : index
    %59 = vector.load %arg8[%c0_23, %c0_24] : memref<1x300xf32, #tpu.memory_space<vmem>>, vector<1x300xf32>
    tpu.vector_store %arg8[%c0_23, %c0_24], %58 {strides = array<i32>} : memref<1x300xf32, #tpu.memory_space<vmem>>, vector<1x300xf32>,
    %c0_25 = arith.constant 0 : index
    %c0_26 = arith.constant 0 : index
    %60 = vector.load %arg9[%c0_25, %c0_26] : memref<1x300xf32, #tpu.memory_space<vmem>>, vector<1x300xf32>
    %61 = arith.addf %60, %50 : vector<1x300xf32>
    %c0_27 = arith.constant 0 : index
    %c0_28 = arith.constant 0 : index
    %62 = vector.load %arg9[%c0_27, %c0_28] : memref<1x300xf32, #tpu.memory_space<vmem>>, vector<1x300xf32>
    tpu.vector_store %arg9[%c0_27, %c0_28], %61 {strides = array<i32>} : memref<1x300xf32, #tpu.memory_space<vmem>>, vector<1x300xf32>,
    %c0_i32_29 = arith.constant 0 : i32
    %63 = arith.cmpi eq, %arg2, %c0_i32_29 : i32
    %64 = arith.extui %63 : i1 to i32
    %c0_i32_30 = arith.constant 0 : i32
    %65 = arith.cmpi ne, %64, %c0_i32_30 : i32
    scf.if %65 {
      %66 = tpu.iota {dimensions = array<i32: 0>} : vector<4x128xi32>
      %c0_i32_31 = arith.constant 0 : i32
      %67 = vector.broadcast %c0_i32_31 : i32 to vector<4x128xi32>
      %68 = arith.cmpi eq, %66, %67 : vector<4x128xi32>
      %c0_32 = arith.constant 0 : index
      %c0_33 = arith.constant 0 : index
      %69 = vector.load %arg6[%c0_32, %c0_33] : memref<1x300xf32, #tpu.memory_space<vmem>>, vector<1x300xf32>
      %70 = vector.shape_cast %69 : vector<1x300xf32> to vector<1x1x300xf32>
      %cst_34 = arith.constant dense<0.000000e+00> : vector<1xf32>
      %71 = vector.multi_reduction <add>, %70, %cst_34 [1, 2] : vector<1x1x300xf32> to vector<1xf32>
      %72 = vector.shape_cast %71 : vector<1xf32> to vector<1x1x1xf32>
      %73 = vector.extract %72[0, 0, 0] : f32 from vector<1x1x1xf32>
      %cst_35 = arith.constant 0.000000e+00 : f32
      %74 = vector.broadcast %73 : f32 to vector<4x128xf32>
      %75 = vector.broadcast %cst_35 : f32 to vector<4x128xf32>
      %76 = arith.select %68, %74, %75 : vector<4x128xi1>, vector<4x128xf32>
      %c1_i32_36 = arith.constant 1 : i32
      %77 = vector.broadcast %c1_i32_36 : i32 to vector<4x128xi32>
      %78 = arith.cmpi eq, %66, %77 : vector<4x128xi32>
      %c0_37 = arith.constant 0 : index
      %c0_38 = arith.constant 0 : index
      %79 = vector.load %arg7[%c0_37, %c0_38] : memref<1x300xf32, #tpu.memory_space<vmem>>, vector<1x300xf32>
      %80 = vector.shape_cast %79 : vector<1x300xf32> to vector<1x1x300xf32>
      %cst_39 = arith.constant dense<0.000000e+00> : vector<1xf32>
      %81 = vector.multi_reduction <add>, %80, %cst_39 [1, 2] : vector<1x1x300xf32> to vector<1xf32>
      %82 = vector.shape_cast %81 : vector<1xf32> to vector<1x1x1xf32>
      %83 = vector.extract %82[0, 0, 0] : f32 from vector<1x1x1xf32>
      %cst_40 = arith.constant 0.000000e+00 : f32
      %84 = vector.broadcast %83 : f32 to vector<4x128xf32>
      %85 = vector.broadcast %cst_40 : f32 to vector<4x128xf32>
      %86 = arith.select %78, %84, %85 : vector<4x128xi1>, vector<4x128xf32>
      %87 = arith.addf %76, %86 : vector<4x128xf32>
      %c2_i32 = arith.constant 2 : i32
      %88 = vector.broadcast %c2_i32 : i32 to vector<4x128xi32>
      %89 = arith.cmpi eq, %66, %88 : vector<4x128xi32>
      %c0_41 = arith.constant 0 : index
      %c0_42 = arith.constant 0 : index
      %90 = vector.load %arg8[%c0_41, %c0_42] : memref<1x300xf32, #tpu.memory_space<vmem>>, vector<1x300xf32>
      %91 = vector.shape_cast %90 : vector<1x300xf32> to vector<1x1x300xf32>
      %cst_43 = arith.constant dense<0.000000e+00> : vector<1xf32>
      %92 = vector.multi_reduction <add>, %91, %cst_43 [1, 2] : vector<1x1x300xf32> to vector<1xf32>
      %93 = vector.shape_cast %92 : vector<1xf32> to vector<1x1x1xf32>
      %94 = vector.extract %93[0, 0, 0] : f32 from vector<1x1x1xf32>
      %cst_44 = arith.constant 0.000000e+00 : f32
      %95 = vector.broadcast %94 : f32 to vector<4x128xf32>
      %96 = vector.broadcast %cst_44 : f32 to vector<4x128xf32>
      %97 = arith.select %89, %95, %96 : vector<4x128xi1>, vector<4x128xf32>
      %98 = arith.addf %87, %97 : vector<4x128xf32>
      %c3_i32 = arith.constant 3 : i32
      %99 = vector.broadcast %c3_i32 : i32 to vector<4x128xi32>
      %100 = arith.cmpi eq, %66, %99 : vector<4x128xi32>
      %c0_45 = arith.constant 0 : index
      %c0_46 = arith.constant 0 : index
      %101 = vector.load %arg9[%c0_45, %c0_46] : memref<1x300xf32, #tpu.memory_space<vmem>>, vector<1x300xf32>
      %102 = vector.shape_cast %101 : vector<1x300xf32> to vector<1x1x300xf32>
      %cst_47 = arith.constant dense<0.000000e+00> : vector<1xf32>
      %103 = vector.multi_reduction <add>, %102, %cst_47 [1, 2] : vector<1x1x300xf32> to vector<1xf32>
      %104 = vector.shape_cast %103 : vector<1xf32> to vector<1x1x1xf32>
      %105 = vector.extract %104[0, 0, 0] : f32 from vector<1x1x1xf32>
      %cst_48 = arith.constant 0.000000e+00 : f32
      %106 = vector.broadcast %105 : f32 to vector<4x128xf32>
      %107 = vector.broadcast %cst_48 : f32 to vector<4x128xf32>
      %108 = arith.select %100, %106, %107 : vector<4x128xi1>, vector<4x128xf32>
      %109 = arith.addf %98, %108 : vector<4x128xf32>
      %c0_49 = arith.constant 0 : index
      %c0_50 = arith.constant 0 : index
      %c0_51 = arith.constant 0 : index
      %c0_52 = arith.constant 0 : index
      %110 = vector.load %arg5[%c0_49, %c0_50, %c0_51, %c0_52] : memref<1x1x4x128xf32, #tpu.memory_space<vmem>>, vector<1x1x4x128xf32>
      %111 = vector.shape_cast %110 : vector<1x1x4x128xf32> to vector<4x128xf32>
      %112 = vector.shape_cast %109 : vector<4x128xf32> to vector<1x1x4x128xf32>
      tpu.vector_store %arg5[%c0_49, %c0_50, %c0_51, %c0_52], %112 {strides = array<i32>} : memref<1x1x4x128xf32, #tpu.memory_space<vmem>>, vector<1x1x4x128xf32>,
    } else {
    }
    return
  }
  func.func @transform_0(%arg0: i32, %arg1: i32, %arg2: i32) -> (i32, i32, i32) {
    %c1_i32 = arith.constant 1 : i32
    %0 = arith.muli %arg1, %c1_i32 : i32
    %1 = arith.addi %0, %arg2 : i32
    %c0_i32 = arith.constant 0 : i32
    %c0_i32_0 = arith.constant 0 : i32
    return %arg0, %c0_i32, %1 : i32, i32, i32
  }
  func.func @transform_1(%arg0: i32, %arg1: i32, %arg2: i32) -> (i32, i32, i32) {
    %c1_i32 = arith.constant 1 : i32
    %0 = arith.muli %arg1, %c1_i32 : i32
    %1 = arith.addi %0, %arg2 : i32
    %c0_i32 = arith.constant 0 : i32
    %c0_i32_0 = arith.constant 0 : i32
    return %arg0, %c0_i32, %1 : i32, i32, i32
  }
  func.func @transform_2(%arg0: i32, %arg1: i32, %arg2: i32) -> (i32, i32, i32, i32) {
    %c0_i32 = arith.constant 0 : i32
    %c0_i32_0 = arith.constant 0 : i32
    %c0_i32_1 = arith.constant 0 : i32
    return %arg0, %arg1, %c0_i32, %c0_i32_0 : i32, i32, i32, i32
  }
}

</mosaic_0001>

<llo_original>
// kernel: action_segmentation_loss.1
$region0: #{action_segmentation_loss.1}
  #allocation0 [shape = 'u32[]', space=smem, size = 0x4, offset = 0x4, fixed_abs, tag = 'smem constant byte address 0x4 - core index']
  #allocation1 [shape = 'u32[144,128]{1,0:T(1,128)}', space=vmem, size = 0x12000, scoped, tag = 'internal scratch']
  #allocation2 [shape = 'f32[1,300]{1,0:T(1,128)}', space=vmem, size = 0x600, scoped, tag = 'scratch operand']
  #allocation3 [shape = 'f32[1,300]{1,0:T(1,128)}', space=vmem, size = 0x600, scoped, tag = 'scratch operand']
  #allocation4 [shape = 'f32[1,300]{1,0:T(1,128)}', space=vmem, size = 0x600, scoped, tag = 'scratch operand']
  #allocation5 [shape = 'f32[1,300]{1,0:T(1,128)}', space=vmem, size = 0x600, scoped, tag = 'scratch operand']
  %s0 = inlined_call_operand.hbm [shape: f32[2,8,300], index: 0, kind: input, shape index: {}]
  %s1 = inlined_call_operand.vmem [shape: s32[2,1,300], index: 1, kind: input, shape index: {}]
  %s2 = inlined_call_operand.vmem [shape: f32[2,1,4,128], index: 2, kind: output, shape index: {}]
  %s3 = sld [smem:[#allocation0]]
  $region53: #{action_segmentation_loss.1} parent=0
    _
  %s5 = ssub.s32 1, %s3
  %s6 = scalar_select 0, %s5, %s3
  $region1: #{action_segmentation_loss.1} parent=0
    #allocation6 [shape = 'u8[24576]{0}', space=vmem, size = 0x6000, scoped, tag = 'input window, operand 0']
    #allocation7 [shape = 's32[2]{0}', space=sflag, size = 0x8, scoped, tag = 'scoped memory for action_segmentation_loss.1']
    %7 = vsyncpa [#allocation7], 0
    %s8 = scalar_lea.sflag [#allocation7], 1
    %9 = vsyncpa %s8, 0
    loop: start=0, step=1, limit=4
    $region2: #{action_segmentation_loss.1} parent=1 // loop_pre_header
      _
    $region3: #{action_segmentation_loss.1} parent=1 // loop_header
      %s11 = sphi 0, %s15
      %p12 = scmp.ge.s32.totalorder %s11, 4
      %s18 = sphi 0, %s37
      %s19 = sphi 0, %s33
      %s20 = sphi 0, %s29
      %s21 = sphi 0, %s18
      %s22 = sphi 0, %s19
      %s23 = sphi 0, %s20
      %s24 = sphi 0, %s21
      %s25 = sphi 0, %s22
      %s26 = sphi 0, %s23
      %s44 = sphi 0, %s46
      %s47 = sphi 0, %s44
      %s48 = sphi 0, %s47
      %s64 = sphi 0, %s48
      %s74 = sphi 0, %s76
      %s77 = sphi 0, %s74
      %s78 = sphi 0, %s77
      %s94 = sphi 0, %s78
      %s102 = sphi 0, %s104
      %s105 = sphi 0, %s102
      %s106 = sphi 0, %s105
      %s122 = sphi 0, %s106
    $region4: #{action_segmentation_loss.1} parent=1 // loop_header_branch
      %14 = sbr.rel (%p12) target = $region8
    $region5: #{action_segmentation_loss.1} parent=1 // loop_body
      %s16 = ssub.s32 %s11, 1
      %s17 = ssub.s32 %s11, 2
      %s27 = sadd.s32 1, %s20
      %p28 = scmp.ge.s32.totalorder %s27, 1
      %s29 = scalar_select %p28, 0, %s27
      %s30 = sadd.s32 1, %s19
      %s31 = scalar_select %p28, %s30, %s19
      %p32 = scmp.ge.s32.totalorder %s31, 1
      %s33 = scalar_select %p32, 0, %s31
      %s34 = sadd.s32 1, %s18
      %s35 = scalar_select %p32, %s34, %s18
      %p36 = scmp.ge.s32.totalorder %s35, 2
      %s37 = scalar_select %p36, 0, %s35
      %s38 = sadd.s32 %s19, %s20
      %s39 = sadd.s32 %s33, %s29
      %s40 = ssub.s32 %s18, %s37
      %s41 = ssub.s32 %s38, %s39
      %s42 = sor.u32 %s40, %s41
      %p43 = scmp.eq.s32.totalorder %s42, 0
      %s45 = sadd.s32 %s44, 1
      %s46 = scalar_select %p43, %s44, %s45
      %p49 = pneg %p43
      %p50 = scmp.eq.s32.totalorder %s11, 1
      %p51 = por %p49, %p50
      %p52 = scmp.ne.s32.totalorder %s44, %s47
      %p53 = scmp.eq.s32.totalorder %s11, 0
      %p54 = por %p52, %p53
      %p55 = scmp.ne.s32.totalorder %s44, %s47
      %p56 = scmp.eq.s32.totalorder %s16, 1
      %p57 = por %p55, %p56
      %p58 = scmp.ne.s32.totalorder %s47, %s48
      %p59 = scmp.eq.s32.totalorder %s16, 0
      %p60 = por %p58, %p59
      %p61 = scmp.ne.s32.totalorder %s47, %s48
      %p62 = scmp.eq.s32.totalorder %s17, 1
      %p63 = por %p61, %p62
      %p65 = scmp.ne.s32.totalorder %s48, %s64
      %p66 = scmp.eq.s32.totalorder %s17, 0
      %p67 = por %p65, %p66
      %s68 = sadd.s32 %s19, %s20
      %s69 = sadd.s32 %s33, %s29
      %s70 = ssub.s32 %s18, %s37
      %s71 = ssub.s32 %s68, %s69
      %s72 = sor.u32 %s70, %s71
      %p73 = scmp.eq.s32.totalorder %s72, 0
      %s75 = sadd.s32 %s74, 1
      %s76 = scalar_select %p73, %s74, %s75
      %p79 = pneg %p73
      %p80 = scmp.eq.s32.totalorder %s11, 1
      %p81 = por %p79, %p80
      %p82 = scmp.ne.s32.totalorder %s74, %s77
      %p83 = scmp.eq.s32.totalorder %s11, 0
      %p84 = por %p82, %p83
      %p85 = scmp.ne.s32.totalorder %s74, %s77
      %p86 = scmp.eq.s32.totalorder %s16, 1
      %p87 = por %p85, %p86
      %p88 = scmp.ne.s32.totalorder %s77, %s78
      %p89 = scmp.eq.s32.totalorder %s16, 0
      %p90 = por %p88, %p89
      %p91 = scmp.ne.s32.totalorder %s77, %s78
      %p92 = scmp.eq.s32.totalorder %s17, 1
      %p93 = por %p91, %p92
      %p95 = scmp.ne.s32.totalorder %s78, %s94
      %p96 = scmp.eq.s32.totalorder %s17, 0
      %p97 = por %p95, %p96
      %s98 = ssub.s32 %s18, %s37
      %s99 = ssub.s32 %s19, %s33
      %s100 = sor.u32 %s98, %s99
      %p101 = scmp.eq.s32.totalorder %s100, 0
      %s103 = sadd.s32 %s102, 1
      %s104 = scalar_select %p101, %s102, %s103
      %p107 = pneg %p101
      %p108 = scmp.eq.s32.totalorder %s11, 1
      %p109 = por %p107, %p108
      %p110 = scmp.ne.s32.totalorder %s102, %s105
      %p111 = scmp.eq.s32.totalorder %s11, 0
      %p112 = por %p110, %p111
      %p113 = scmp.ne.s32.totalorder %s102, %s105
      %p114 = scmp.eq.s32.totalorder %s16, 1
      %p115 = por %p113, %p114
      %p116 = scmp.ne.s32.totalorder %s105, %s106
      %p117 = scmp.eq.s32.totalorder %s16, 0
      %p118 = por %p116, %p117
      %p119 = scmp.ne.s32.totalorder %s105, %s106
      %p120 = scmp.eq.s32.totalorder %s17, 1
      %p121 = por %p119, %p120
      %p123 = scmp.ne.s32.totalorder %s106, %s122
      %p124 = scmp.eq.s32.totalorder %s17, 0
      %p125 = por %p123, %p124
      %p126 = scmp.le.s32.totalorder 1, %s11
      %p127 = scmp.lt.s32.totalorder %s11, 3
      %p128 = pnand %p126, %p127
      %p129 = pneg %p128
      // Predicated region
      $region9: #{action_segmentation_loss.1} parent=5 // pred_check
        _
      $region10: #{action_segmentation_loss.1} parent=5 // pred_check_branch
        %131 = sbr.rel (%p128) target = $region12
      $region11: #{action_segmentation_loss.1} parent=5 // pred_region
        %s132 = ssub.s32 %s11, 1
      $region12: #{action_segmentation_loss.1} parent=5 // pred_fallthru
        _
      %p133 = scmp.lt.s32.totalorder %s11, 2
      // Predicated region
      $region13: #{action_segmentation_loss.1} parent=5 // pred_check
        %p134 = pneg %p133
      $region14: #{action_segmentation_loss.1} parent=5 // pred_check_branch
        %136 = sbr.rel (%p134) target = $region16
      $region15: #{action_segmentation_loss.1} parent=5 // pred_region
        // Predicated region
        $region17: #{action_segmentation_loss.1} parent=15 // pred_check
          %p137 = pneg %p54
        $region18: #{action_segmentation_loss.1} parent=15 // pred_check_branch
          %139 = sbr.rel (%p137) target = $region20
        $region19: #{action_segmentation_loss.1} parent=15 // pred_region
          %s140 = sand.u32 %s44, 1
          %s141 = scalar_lea.sflag [#allocation7], %s140
          %s142 = sand.u32 %s44, 1
          %s143 = smul.addr %s142, 24
          %s144 = scalar_lea.vmem [#allocation6], %s143
          %s145 = sadd.s32 %s19, %s20
          %s146 = smul.u32 3, %s145
          %s148 = ssub.s32 384, 384
          %149 = vsyncadd %s141, %s148
          %s150 = smul.addr %s18, 3
          %s151 = sadd.s32 %s146, %s150
          %s152 = smul.addr %s151, 128
          %s153 = scalar_lea.hbm %s0, %s152
          %s155 = sshll.u32 %s144, 4
          %s156 = int_to_ptr.vmem [resolvable:$true] %s155
          %158 = dma.hbm_to_vmem [thread:$0]  %s153, 384, %s156, %s141
        $region20: #{action_segmentation_loss.1} parent=15 // pred_fallthru
          _
        // Predicated region
        $region21: #{action_segmentation_loss.1} parent=15 // pred_check
          %p159 = pneg %p84
        $region22: #{action_segmentation_loss.1} parent=15 // pred_check_branch
          %161 = sbr.rel (%p159) target = $region24
        $region23: #{action_segmentation_loss.1} parent=15 // pred_region
          %s162 = sadd.s32 %s19, %s20
          %s163 = smul.u32 3, %s162
          %p164 = scmp.lt.s32.totalorder %s18, 1
          %s165 = scalar_select %p164, %s18, 1
          %p166 = scmp.lt.s32.totalorder %s163, 2
          %s167 = scalar_select %p166, %s163, 2
          %s168 = smul.addr %s165, 3
          %s169 = sadd.s32 %s167, %s168
          %s170 = scalar_lea.vmem %s1, %s169
          %s171 = sadd.s32 %s19, %s20
          %s172 = smul.u32 3, %s171
        $region24: #{action_segmentation_loss.1} parent=15 // pred_fallthru
          _
      $region16: #{action_segmentation_loss.1} parent=5 // pred_fallthru
        _
      %p173 = scmp.le.s32.totalorder 1, %s11
      %p174 = scmp.lt.s32.totalorder %s11, 3
      %p175 = pnand %p173, %p174
      %p176 = pneg %p175
      // Predicated region
      $region25: #{action_segmentation_loss.1} parent=5 // pred_check
        _
      $region26: #{action_segmentation_loss.1} parent=5 // pred_check_branch
        %178 = sbr.rel (%p175) target = $region28
      $region27: #{action_segmentation_loss.1} parent=5 // pred_region
        %s179 = ssub.s32 %s11, 1
        %s180 = sand.u32 %s47, 1
        %s181 = scalar_lea.sflag [#allocation7], %s180
        %s182 = sand.u32 %s47, 1
        %s183 = smul.addr %s182, 24
        %s184 = scalar_lea.vmem [#allocation6], %s183
        // Predicated region
        $region29: #{action_segmentation_loss.1} parent=27 // pred_check
          %p185 = pneg %p60
        $region30: #{action_segmentation_loss.1} parent=27 // pred_check_branch
          %187 = sbr.rel (%p185) target = $region32
        $region31: #{action_segmentation_loss.1} parent=27 // pred_region
          %188 = dma.done %s181, 384
        $region32: #{action_segmentation_loss.1} parent=27 // pred_fallthru
          _
        %s189 = sand.u32 %s47, 1
        %s190 = scalar_lea.sflag [#allocation7], %s189
        %s191 = sand.u32 %s47, 1
        %s192 = smul.addr %s191, 24
        %s193 = scalar_lea.vmem [#allocation6], %s192
        %p194 = pneg %p60
        %p195 = pneg %p57
        %s196 = sadd.s32 %s22, %s23
        %s197 = smul.u32 3, %s196
        %p198 = scmp.lt.s32.totalorder %s21, 1
        %s199 = scalar_select %p198, %s21, 1
        %p200 = scmp.lt.s32.totalorder %s197, 2
        %s201 = scalar_select %p200, %s197, 2
        %s202 = smul.addr %s199, 3
        %s203 = sadd.s32 %s201, %s202
        %s204 = scalar_lea.vmem %s1, %s203
        %p205 = pneg %p90
        %p206 = pneg %p87
        %p207 = pneg %p118
        %p208 = pneg %p115
        %p209 = scmp.lt.s32.totalorder %s21, 1
        %s210 = scalar_select %p209, %s21, 1
        %p211 = scmp.lt.s32.totalorder %s22, 0
        %s212 = scalar_select %p211, %s22, 0
        %s213 = sadd.s32 %s212, %s210
        %s214 = smul.addr %s213, 4
        %s215 = scalar_lea.vmem %s2, %s214
        %s216 = sadd.s32 %s22, %s23
        %s217 = smul.u32 3, %s216
        %s218 = sadd.s32 %s22, %s23
        %s219 = smul.u32 3, %s218
        %p220 = scmp.lt.s32.totalorder %s21, 1
        %s221 = scalar_select %p220, %s21, 1
        %p222 = scmp.lt.s32.totalorder %s219, 2
        %s223 = scalar_select %p222, %s219, 2
        %s224 = smul.addr %s221, 3
        %s225 = sadd.s32 %s223, %s224
        %s226 = scalar_lea.vmem %s1, %s225
        %s227 = sadd.s32 %s22, %s23
        %s228 = smul.u32 3, %s227
        %p229 = scmp.lt.s32.totalorder %s21, 1
        %s230 = scalar_select %p229, %s21, 1
        %p231 = scmp.lt.s32.totalorder %s22, 0
        %s232 = scalar_select %p231, %s22, 0
        %s233 = sadd.s32 %s232, %s230
        %s234 = smul.addr %s233, 4
        %s235 = scalar_lea.vmem %s2, %s234
        %p236 = scmp.eq.s32.totalorder %s23, 0
        // Predicated region
        $region33: #{action_segmentation_loss.1} parent=27 // pred_check
          %p237 = pneg %p236
        $region34: #{action_segmentation_loss.1} parent=27 // pred_check_branch
          %239 = sbr.rel (%p237) target = $region36
        $region35: #{action_segmentation_loss.1} parent=27 // pred_region
          %v240 = vlaneseq
          %vm241 = vcmp.ge.s32.totalorder %v240, 0
          %vm242 = vcmp.lt.s32.totalorder %v240, 300
          %vm243 = vmand %vm241, %vm242
          %244 = vst.msk [vmem:[#allocation2] sm:$0x7] %vm243, 0.0
          %245 = vst.msk [vmem:[#allocation3] sm:$0x7] %vm243, 0.0
          %246 = vst.msk [vmem:[#allocation4] sm:$0x7] %vm243, 0.0
          %247 = vst.msk [vmem:[#allocation5] sm:$0x7] %vm243, 0.0
        $region36: #{action_segmentation_loss.1} parent=27 // pred_fallthru
          _
        %s248 = sadd.s32 %s22, %s23
        %s249 = smul.u32 %s248, 300
        %v250 = vlaneseq
        %v251 = vshrl.u32 %v250, 7
        %v252 = vlaneseq
        %v253 = vand.u32 %v252, 127
        %v254 = vadd.s32 %v253, 128
        %v255 = vadd.s32 %v253, 256
        %v256 = vld [vmem:[%s184] sm:$0xff]
        %v257 = vld [vmem:[%s184 + $0x8] sm:$0xff]
        %v258 = vld [vmem:[%s184 + $0x10] sm:$0xff]
        %v259 = vld [vmem:[%s226] sm:$0x7]
        %v260 = vstv %s249
        %v261 = vadd.s32 %v260, %v253
        %v262 = vadd.s32 %v260, %v254
        %v263 = vadd.s32 %v260, %v255
        %v264 = vrot.slane %v256, 4
        %v265 = vmax.f32 %v256, %v264
        %v266 = vrot.slane %v265, 2
        %v267 = vmax.f32 %v265, %v266
        %v268 = vrot.slane %v267, 1
        %v269 = vmax.f32 %v267, %v268
        %v270 = vrot.slane %v257, 4
        %v271 = vmax.f32 %v257, %v270
        %v272 = vrot.slane %v271, 2
        %v273 = vmax.f32 %v271, %v272
        %v274 = vrot.slane %v273, 1
        %v275 = vmax.f32 %v273, %v274
        %vm276 = vcmask 359424
        %v277 = vsel %vm276, %v258, -inf
        %v278 = vrot.slane %v277, 4
        %v279 = vmax.f32 %v277, %v278
        %v280 = vrot.slane %v279, 2
        %v281 = vmax.f32 %v279, %v280
        %v282 = vrot.slane %v281, 1
        %v283 = vmax.f32 %v281, %v282
        %v284 = vsub.f32 %v256, %v269
        %v285 = vsub.f32 %v257, %v275
        %v286 = vsub.f32 %v258, %v283
        %v287 = vmul.f32 %v284, 1.442695
        %v288 = vpow.pop %v287
        %v289 = vmul.f32 %v285, 1.442695
        %v290 = vpow.pop %v289
        %v291 = vmul.f32 %v286, 1.442695
        %v292 = vpow.pop %v291
        %v293 = vlaneseq
        %v294 = vshrl.u32 %v293, 7
        %v295 = vsub.s32 0, %v294
        %v296 = vrot.slane %v259, %v295
        %v297 = vlaneseq
        %v298 = vshrl.u32 %v297, 7
        %v299 = vsub.s32 1, %v298
        %v300 = vrot.slane %v259, %v299
        %v301 = vlaneseq
        %v302 = vshrl.u32 %v301, 7
        %v303 = vsub.s32 2, %v302
        %v304 = vrot.slane %v259, %v303
        %vm305 = vcmp.eq.s32.totalorder %v251, %v296
        %vm306 = vcmp.eq.s32.totalorder %v251, %v300
        %vm307 = vcmp.eq.s32.totalorder %v251, %v304
        %v308 = vsel %vm305, %v256, 0.0
        %v309 = vsel %vm306, %v257, 0.0
        %v310 = vsel %vm307, %v258, 0.0
        %v311 = vrot.slane %v288, 4
        %v312 = vadd.f32 %v288, %v311
        %v313 = vrot.slane %v312, 2
        %v314 = vadd.f32 %v312, %v313
        %v315 = vrot.slane %v314, 1
        %v316 = vadd.f32 %v314, %v315
        %v317 = vrot.slane %v290, 4
        %v318 = vadd.f32 %v290, %v317
        %v319 = vrot.slane %v318, 2
        %v320 = vadd.f32 %v318, %v319
        %v321 = vrot.slane %v320, 1
        %v322 = vadd.f32 %v320, %v321
        %v323 = vsel %vm276, %v292, 0.0
        %v324 = vrot.slane %v323, 4
        %v325 = vadd.f32 %v323, %v324
        %v326 = vrot.slane %v325, 2
        %v327 = vadd.f32 %v325, %v326
        %v328 = vrot.slane %v327, 1
        %v329 = vadd.f32 %v327, %v328
        %v330 = vrot.slane %v308, 4
        %v331 = vadd.f32 %v308, %v330
        %v332 = vrot.slane %v331, 2
        %v333 = vadd.f32 %v331, %v332
        %v334 = vrot.slane %v333, 1
        %v335 = vadd.f32 %v333, %v334
        %v336 = vrot.slane %v309, 4
        %v337 = vadd.f32 %v309, %v336
        %v338 = vrot.slane %v337, 2
        %v339 = vadd.f32 %v337, %v338
        %v340 = vrot.slane %v339, 1
        %v341 = vadd.f32 %v339, %v340
        %v342 = vsel %vm276, %v310, 0.0
        %v343 = vrot.slane %v342, 4
        %v344 = vadd.f32 %v342, %v343
        %v345 = vrot.slane %v344, 2
        %v346 = vadd.f32 %v344, %v345
        %v347 = vrot.slane %v346, 1
        %v348 = vadd.f32 %v346, %v347
        %v349 = vlog2.pop %v316
        %v350 = vmul.f32 %v349, 0.6931472
        %v351 = vlog2.pop %v322
        %v352 = vmul.f32 %v351, 0.6931472
        %v353 = vlog2.pop %v329
        %v354 = vmul.f32 %v353, 0.6931472
        %v355 = vadd.f32 %v269, %v350
        %v356 = vadd.f32 %v275, %v352
        %v357 = vadd.f32 %v283, %v354
        %v358 = vsub.f32 %v355, %v335
        %v359 = vsub.f32 %v356, %v341
        %v360 = vsub.f32 %v357, %v348
        %vm361 = vcmp.lt.s32.totalorder %v261, 300
        %vm362 = vcmp.lt.s32.totalorder %v262, 300
        %vm363 = vcmp.lt.s32.totalorder %v263, 300
        %vm364 = vcmp.ne.s32.totalorder %v259, 4294967196
        %v365 = vsel %vm364, 1, 0
        %v366 = vlaneseq
        %v367 = vshrl.u32 %v366, 7
        %v368 = vsub.s32 0, %v367
        %v369 = vrot.slane %v365, %v368
        %v370 = vlaneseq
        %v371 = vshrl.u32 %v370, 7
        %v372 = vsub.s32 1, %v371
        %v373 = vrot.slane %v365, %v372
        %v374 = vlaneseq
        %v375 = vshrl.u32 %v374, 7
        %v376 = vsub.s32 2, %v375
        %v377 = vrot.slane %v365, %v376
        %vm378 = vcmp.ne.s32.totalorder %v369, 0
        %vm379 = vcmp.ne.s32.totalorder %v373, 0
        %vm380 = vcmp.ne.s32.totalorder %v377, 0
        %vm381 = vmand %vm361, %vm378
        %vm382 = vmand %vm362, %vm379
        %vm383 = vmand %vm363, %vm380
        %vm384 = vcmp.ne.s32.totalorder %v259, 255
        %v385 = vsel %vm384, 1, 0
        %v386 = vlaneseq
        %v387 = vshrl.u32 %v386, 7
        %v388 = vsub.s32 0, %v387
        %v389 = vrot.slane %v385, %v388
        %v390 = vlaneseq
        %v391 = vshrl.u32 %v390, 7
        %v392 = vsub.s32 1, %v391
        %v393 = vrot.slane %v385, %v392
        %v394 = vlaneseq
        %v395 = vshrl.u32 %v394, 7
        %v396 = vsub.s32 2, %v395
        %v397 = vrot.slane %v385, %v396
        %vm398 = vcmp.ne.s32.totalorder %v389, 0
        %vm399 = vcmp.ne.s32.totalorder %v393, 0
        %vm400 = vcmp.ne.s32.totalorder %v397, 0
        %vm401 = vmand %vm381, %vm398
        %vm402 = vmand %vm382, %vm399
        %vm403 = vmand %vm383, %vm400
        %v404 = vsel %vm381, %v358, 0.0
        %v405 = vsel %vm382, %v359, 0.0
        %v406 = vsel %vm383, %v360, 0.0
        %v407 = vadd.f32 %v404, 0.0
        %v408 = vadd.f32 %v405, 0.0
        %v409 = vadd.f32 %v406, 0.0
        %v410 = vsel %vm381, 1, 0
        %v411 = vsel %vm382, 1, 0
        %v412 = vsel %vm383, 1, 0
        %v413 = vcvt.s32.f32 %v410
        %v414 = vcvt.s32.f32 %v411
        %v415 = vcvt.s32.f32 %v412
        %v416 = vadd.f32 %v413, 0.0
        %v417 = vadd.f32 %v414, 0.0
        %v418 = vadd.f32 %v415, 0.0
        %v419 = vsel %vm401, %v358, 0.0
        %v420 = vsel %vm402, %v359, 0.0
        %v421 = vsel %vm403, %v360, 0.0
        %v422 = vadd.f32 %v419, 0.0
        %v423 = vadd.f32 %v420, 0.0
        %v424 = vadd.f32 %v421, 0.0
        %v425 = vsel %vm401, 1, 0
        %v426 = vsel %vm402, 1, 0
        %v427 = vsel %vm403, 1, 0
        %v428 = vcvt.s32.f32 %v425
        %v429 = vcvt.s32.f32 %v426
        %v430 = vcvt.s32.f32 %v427
        %v431 = vadd.f32 %v428, 0.0
        %v432 = vadd.f32 %v429, 0.0
        %v433 = vadd.f32 %v430, 0.0
        %v434 = vld [vmem:[#allocation2] sm:$0x7]
        %v438 = vcombine.low %v407, %v408
        %v440 = vunpack.c.l.s4 1966171168
        %v441 = vunpack.c.0.s8 %v440
        %v442 = vlaneseq
        %v443 = vshrl.u32 %v442, 7
        %v444 = vsub.s32 %v441, %v443
        %v445 = vrot.slane %v438, %v444
        %v447 = vunpack.c.l.s4 1966171168
        %v448 = vunpack.c.0.s8 %v447
        %v449 = vlaneseq
        %v450 = vshrl.u32 %v449, 7
        %v451 = vsub.s32 %v448, %v450
        %v452 = vrot.slane %v409, %v451
        %v453 = vcombine.low %v445, %v452
        %v455 = vunpack.c.l.s4 1966171168
        %v456 = vunpack.c.0.s8 %v455
        %v457 = vlaneseq
        %v458 = vshrl.u32 %v457, 7
        %v459 = vsub.s32 %v456, %v458
        %v460 = vrot.slane %v453, %v459
        %v462 = vadd.f32 %v434, %v460
        %v463 = vlaneseq
        %vm464 = vcmp.ge.s32.totalorder %v463, 0
        %vm465 = vcmp.lt.s32.totalorder %v463, 300
        %vm466 = vmand %vm464, %vm465
        %467 = vst.msk [vmem:[#allocation2] sm:$0x7] %vm466, %v462
        %v468 = vld [vmem:[#allocation3] sm:$0x7]
        %v472 = vcombine.low %v416, %v417
        %v474 = vunpack.c.l.s4 1966171168
        %v475 = vunpack.c.0.s8 %v474
        %v476 = vlaneseq
        %v477 = vshrl.u32 %v476, 7
        %v478 = vsub.s32 %v475, %v477
        %v479 = vrot.slane %v472, %v478
        %v481 = vunpack.c.l.s4 1966171168
        %v482 = vunpack.c.0.s8 %v481
        %v483 = vlaneseq
        %v484 = vshrl.u32 %v483, 7
        %v485 = vsub.s32 %v482, %v484
        %v486 = vrot.slane %v418, %v485
        %v487 = vcombine.low %v479, %v486
        %v489 = vunpack.c.l.s4 1966171168
        %v490 = vunpack.c.0.s8 %v489
        %v491 = vlaneseq
        %v492 = vshrl.u32 %v491, 7
        %v493 = vsub.s32 %v490, %v492
        %v494 = vrot.slane %v487, %v493
        %v496 = vadd.f32 %v468, %v494
        %497 = vst.msk [vmem:[#allocation3] sm:$0x7] %vm466, %v496
        %v498 = vld [vmem:[#allocation4] sm:$0x7]
        %v502 = vcombine.low %v422, %v423
        %v504 = vunpack.c.l.s4 1966171168
        %v505 = vunpack.c.0.s8 %v504
        %v506 = vlaneseq
        %v507 = vshrl.u32 %v506, 7
        %v508 = vsub.s32 %v505, %v507
        %v509 = vrot.slane %v502, %v508
        %v511 = vunpack.c.l.s4 1966171168
        %v512 = vunpack.c.0.s8 %v511
        %v513 = vlaneseq
        %v514 = vshrl.u32 %v513, 7
        %v515 = vsub.s32 %v512, %v514
        %v516 = vrot.slane %v424, %v515
        %v517 = vcombine.low %v509, %v516
        %v519 = vunpack.c.l.s4 1966171168
        %v520 = vunpack.c.0.s8 %v519
        %v521 = vlaneseq
        %v522 = vshrl.u32 %v521, 7
        %v523 = vsub.s32 %v520, %v522
        %v524 = vrot.slane %v517, %v523
        %v526 = vadd.f32 %v498, %v524
        %527 = vst.msk [vmem:[#allocation4] sm:$0x7] %vm466, %v526
        %v528 = vld [vmem:[#allocation5] sm:$0x7]
        %v532 = vcombine.low %v431, %v432
        %v534 = vunpack.c.l.s4 1966171168
        %v535 = vunpack.c.0.s8 %v534
        %v536 = vlaneseq
        %v537 = vshrl.u32 %v536, 7
        %v538 = vsub.s32 %v535, %v537
        %v539 = vrot.slane %v532, %v538
        %v541 = vunpack.c.l.s4 1966171168
        %v542 = vunpack.c.0.s8 %v541
        %v543 = vlaneseq
        %v544 = vshrl.u32 %v543, 7
        %v545 = vsub.s32 %v542, %v544
        %v546 = vrot.slane %v433, %v545
        %v547 = vcombine.low %v539, %v546
        %v549 = vunpack.c.l.s4 1966171168
        %v550 = vunpack.c.0.s8 %v549
        %v551 = vlaneseq
        %v552 = vshrl.u32 %v551, 7
        %v553 = vsub.s32 %v550, %v552
        %v554 = vrot.slane %v547, %v553
        %v556 = vadd.f32 %v528, %v554
        %557 = vst.msk [vmem:[#allocation5] sm:$0x7] %vm466, %v556
        // Predicated region
        $region37: #{action_segmentation_loss.1} parent=27 // pred_check
          %p558 = pneg %p236
        $region38: #{action_segmentation_loss.1} parent=27 // pred_check_branch
          %560 = sbr.rel (%p558) target = $region40
        $region39: #{action_segmentation_loss.1} parent=27 // pred_region
          %vm561 = vcmp.eq.s32.totalorder %v251, 0
          %v562 = vld [vmem:[#allocation2] sm:$0x7]
          %v564 = vlaneseq
          %v565 = vshrl.u32 %v564, 7
          %v566 = vsub.s32 0, %v565
          %v567 = vrot.slane %v562, %v566
          %v568 = vlaneseq
          %v569 = vshrl.u32 %v568, 7
          %v570 = vsub.s32 1, %v569
          %v571 = vrot.slane %v562, %v570
          %v572 = vlaneseq
          %v573 = vshrl.u32 %v572, 7
          %v574 = vsub.s32 2, %v573
          %v575 = vrot.slane %v562, %v574
          %vm579 = vcmask 1040384
          %v580 = vsel %vm579, %v567, 0.0
          %v581 = vsel %vm579, %v571, 0.0
          %v582 = vadd.f32 %v580, %v581
          %vm583 = vcmask 352256
          %v584 = vsel %vm583, %v575, 0.0
          %v585 = vadd.f32 %v582, %v584
          %586 = vadd.xlane.f32.xlu0 %v585
          %v587 = vpop.xlane.xlu0 %586
          %v588 = vrot.slane %v587, 4
          %v589 = vadd.f32 %v587, %v588
          %v590 = vrot.slane %v589, 2
          %v591 = vadd.f32 %v589, %v590
          %v592 = vrot.slane %v591, 1
          %v593 = vadd.f32 %v591, %v592
          %s594 = vtos %v593
          %v595 = vstv %s594
          %v596 = vsel %vm561, %v595, 0.0
          %vm597 = vcmp.eq.s32.totalorder %v251, 1
          %v598 = vld [vmem:[#allocation3] sm:$0x7]
          %v600 = vlaneseq
          %v601 = vshrl.u32 %v600, 7
          %v602 = vsub.s32 0, %v601
          %v603 = vrot.slane %v598, %v602
          %v604 = vlaneseq
          %v605 = vshrl.u32 %v604, 7
          %v606 = vsub.s32 1, %v605
          %v607 = vrot.slane %v598, %v606
          %v608 = vlaneseq
          %v609 = vshrl.u32 %v608, 7
          %v610 = vsub.s32 2, %v609
          %v611 = vrot.slane %v598, %v610
          %v615 = vsel %vm579, %v603, 0.0
          %v616 = vsel %vm579, %v607, 0.0
          %v617 = vadd.f32 %v615, %v616
          %v618 = vsel %vm583, %v611, 0.0
          %v619 = vadd.f32 %v617, %v618
          %620 = vadd.xlane.f32.xlu0 %v619
          %v621 = vpop.xlane.xlu0 %620
          %v622 = vrot.slane %v621, 4
          %v623 = vadd.f32 %v621, %v622
          %v624 = vrot.slane %v623, 2
          %v625 = vadd.f32 %v623, %v624
          %v626 = vrot.slane %v625, 1
          %v627 = vadd.f32 %v625, %v626
          %s628 = vtos %v627
          %v629 = vstv %s628
          %v630 = vsel %vm597, %v629, 0.0
          %v631 = vadd.f32 %v596, %v630
          %vm632 = vcmp.eq.s32.totalorder %v251, 2
          %v633 = vld [vmem:[#allocation4] sm:$0x7]
          %v635 = vlaneseq
          %v636 = vshrl.u32 %v635, 7
          %v637 = vsub.s32 0, %v636
          %v638 = vrot.slane %v633, %v637
          %v639 = vlaneseq
          %v640 = vshrl.u32 %v639, 7
          %v641 = vsub.s32 1, %v640
          %v642 = vrot.slane %v633, %v641
          %v643 = vlaneseq
          %v644 = vshrl.u32 %v643, 7
          %v645 = vsub.s32 2, %v644
          %v646 = vrot.slane %v633, %v645
          %v650 = vsel %vm579, %v638, 0.0
          %v651 = vsel %vm579, %v642, 0.0
          %v652 = vadd.f32 %v650, %v651
          %v653 = vsel %vm583, %v646, 0.0
          %v654 = vadd.f32 %v652, %v653
          %655 = vadd.xlane.f32.xlu0 %v654
          %v656 = vpop.xlane.xlu0 %655
          %v657 = vrot.slane %v656, 4
          %v658 = vadd.f32 %v656, %v657
          %v659 = vrot.slane %v658, 2
          %v660 = vadd.f32 %v658, %v659
          %v661 = vrot.slane %v660, 1
          %v662 = vadd.f32 %v660, %v661
          %s663 = vtos %v662
          %v664 = vstv %s663
          %v665 = vsel %vm632, %v664, 0.0
          %v666 = vadd.f32 %v631, %v665
          %vm667 = vcmp.eq.s32.totalorder %v251, 3
          %v668 = vld [vmem:[#allocation5] sm:$0x7]
          %v670 = vlaneseq
          %v671 = vshrl.u32 %v670, 7
          %v672 = vsub.s32 0, %v671
          %v673 = vrot.slane %v668, %v672
          %v674 = vlaneseq
          %v675 = vshrl.u32 %v674, 7
          %v676 = vsub.s32 1, %v675
          %v677 = vrot.slane %v668, %v676
          %v678 = vlaneseq
          %v679 = vshrl.u32 %v678, 7
          %v680 = vsub.s32 2, %v679
          %v681 = vrot.slane %v668, %v680
          %v685 = vsel %vm579, %v673, 0.0
          %v686 = vsel %vm579, %v677, 0.0
          %v687 = vadd.f32 %v685, %v686
          %v688 = vsel %vm583, %v681, 0.0
          %v689 = vadd.f32 %v687, %v688
          %690 = vadd.xlane.f32.xlu0 %v689
          %v691 = vpop.xlane.xlu0 %690
          %v692 = vrot.slane %v691, 4
          %v693 = vadd.f32 %v691, %v692
          %v694 = vrot.slane %v693, 2
          %v695 = vadd.f32 %v693, %v694
          %v696 = vrot.slane %v695, 1
          %v697 = vadd.f32 %v695, %v696
          %s698 = vtos %v697
          %v699 = vstv %s698
          %v700 = vsel %vm667, %v699, 0.0
          %v701 = vadd.f32 %v666, %v700
          %702 = vst [vmem:[%s235] sm:$0xf] %v701
        $region40: #{action_segmentation_loss.1} parent=27 // pred_fallthru
          _
        %p703 = scmp.lt.s32.totalorder %s21, 1
        %s704 = scalar_select %p703, %s21, 1
        %p705 = scmp.lt.s32.totalorder %s22, 0
        %s706 = scalar_select %p705, %s22, 0
        %s707 = sadd.s32 %s706, %s704
        %s708 = smul.addr %s707, 4
        %s709 = scalar_lea.vmem %s2, %s708
        // Predicated region
        $region41: #{action_segmentation_loss.1} parent=27 // pred_check
          %p710 = pneg %p115
        $region42: #{action_segmentation_loss.1} parent=27 // pred_check_branch
          %712 = sbr.rel (%p710) target = $region44
        $region43: #{action_segmentation_loss.1} parent=27 // pred_region
          _
        $region44: #{action_segmentation_loss.1} parent=27 // pred_fallthru
          _
      $region28: #{action_segmentation_loss.1} parent=5 // pred_fallthru
        _
      %p713 = scmp.le.s32.totalorder 2, %s11
      // Predicated region
      $region45: #{action_segmentation_loss.1} parent=5 // pred_check
        %p714 = pneg %p713
      $region46: #{action_segmentation_loss.1} parent=5 // pred_check_branch
        %716 = sbr.rel (%p714) target = $region48
      $region47: #{action_segmentation_loss.1} parent=5 // pred_region
        %s717 = ssub.s32 %s11, 2
        // Predicated region
        $region49: #{action_segmentation_loss.1} parent=47 // pred_check
          %p718 = pneg %p121
        $region50: #{action_segmentation_loss.1} parent=47 // pred_check_branch
          %720 = sbr.rel (%p718) target = $region52
        $region51: #{action_segmentation_loss.1} parent=47 // pred_region
          %p721 = scmp.lt.s32.totalorder %s24, 1
          %s722 = scalar_select %p721, %s24, 1
          %p723 = scmp.lt.s32.totalorder %s25, 0
          %s724 = scalar_select %p723, %s25, 0
          %s725 = sadd.s32 %s724, %s722
          %s726 = smul.addr %s725, 4
          %s727 = scalar_lea.vmem %s2, %s726
        $region52: #{action_segmentation_loss.1} parent=47 // pred_fallthru
          _
      $region48: #{action_segmentation_loss.1} parent=5 // pred_fallthru
        _
    $region6: #{action_segmentation_loss.1} parent=1 // loop_footer
      %s15 = sadd.s32 1, %s11
    $region7: #{action_segmentation_loss.1} parent=1 // loop_footer_branch
      %10 = sbr.rel target = $region3
    $region8: #{action_segmentation_loss.1} parent=1 // loop_exit
      _
    %728 = vsyncpa [#allocation7], 1
    %s729 = scalar_lea.sflag [#allocation7], 1
    %730 = vsyncpa %s729, 1

</llo_original>
